<compile_context>
chip_gen: v6e
topology: v6e:2x2x1
jax: 0.10.0
libtpu: 0.0.40
codegen_flags: <defaults>
</compile_context>

<pallas_src>
import jax
import jax.numpy as jnp
from jax.experimental import pallas as pl
from jax.experimental.pallas import tpu as pltpu

_HEAD_PAD = 128      # lane-dense padded width of the action head
_NEG_BIG = -1e30     # pad-lane bias: exp(pad - max) underflows to 0 in softmax


# ---------------------------------------------------------------------------
# Single fused Pallas kernel: concat + Linear(2F,256) + ReLU + Linear(256,A)
# + softmax, everything resident in VMEM.
# ---------------------------------------------------------------------------
def _inverse_model_kernel(xc_ref, xn_ref, w1c_ref, w1n_ref, b1_ref,
                          w2_ref, b2_ref, o_ref):
    # cat([x_cur, x_next], dim=1) @ W1.T  ==  x_cur @ W1c + x_next @ W1n
    h = jnp.dot(xc_ref[...], w1c_ref[...], preferred_element_type=jnp.float32)
    h = h + jnp.dot(xn_ref[...], w1n_ref[...], preferred_element_type=jnp.float32)
    h = jnp.maximum(h + b1_ref[...], 0.0)                       # ReLU (f32)

    # Head, padded to 128 lanes (pad weights = 0, pad bias = -1e30).
    logits = jnp.dot(h, w2_ref[...], preferred_element_type=jnp.float32) + b2_ref[...]

    # Row-wise softmax over the padded head; pad lanes contribute exp(~-1e30)=0.
    m = jnp.max(logits, axis=-1, keepdims=True)
    e = jnp.exp(logits - m)
    s = jnp.sum(e, axis=-1, keepdims=True)
    o_ref[...] = e / s


# ---------------------------------------------------------------------------
# One-time parameter preprocessing (hoisted off the per-forward critical path)
# ---------------------------------------------------------------------------
def init_params(key, num_features, num_actions):
    """PyTorch-shaped parameters: fc1 (256, 2F)+(256,), fc2 (A, 256)+(A,)."""
    k1, k2, k3, k4 = jax.random.split(key, 4)
    w1 = jax.random.normal(k1, (256, 2 * num_features), jnp.float32) * 0.05
    b1 = jax.random.normal(k2, (256,), jnp.float32) * 0.05
    w2 = jax.random.normal(k3, (num_actions, 256), jnp.float32) * 0.05
    b2 = jax.random.normal(k4, (num_actions,), jnp.float32) * 0.05
    return {"fc1": (w1, b1), "fc2": (w2, b2)}


def prepare_params(params):
    """Transpose / split / pad weights once, in kernel-ready layout."""
    w1, b1 = params["fc1"]          # (256, 2F), (256,)
    w2, b2 = params["fc2"]          # (A, 256),  (A,)
    two_f = w1.shape[1]
    f = two_f // 2
    a = w2.shape[0]
    assert a <= _HEAD_PAD, "num_actions must fit in the 128-lane padded head"

    w1t = jnp.transpose(w1)                         # (2F, 256)
    w1c = w1t[:f]                                   # x_cur  half (F, 256)
    w1n = w1t[f:]                                   # x_next half (F, 256)
    b1r = b1.reshape(1, -1)                         # (1, 256)

    w2t = jnp.transpose(w2)                         # (256, A)
    w2p = jnp.pad(w2t, ((0, 0), (0, _HEAD_PAD - a)))                    # zeros
    b2p = jnp.pad(b2.reshape(1, -1), ((0, 0), (0, _HEAD_PAD - a)),
                  constant_values=_NEG_BIG)                             # -1e30
    return {"w1c": w1c, "w1n": w1n, "b1": b1r, "w2": w2p, "b2": b2p,
            "num_actions": a}


# ---------------------------------------------------------------------------
# Forward wrapper: single pallas_call, then slice the valid action columns.
# ---------------------------------------------------------------------------
def inverse_model_forward(prepped, x_cur, x_next):
    B, F = x_cur.shape
    H = prepped["w1c"].shape[1]
    A = prepped["num_actions"]

    out_padded = pl.pallas_call(
        _inverse_model_kernel,
        grid=(1,),
        in_specs=[
            pl.BlockSpec((B, F), lambda i: (0, 0)),             # x_cur
            pl.BlockSpec((B, F), lambda i: (0, 0)),             # x_next
            pl.BlockSpec((F, H), lambda i: (0, 0)),             # W1 (cur half)
            pl.BlockSpec((F, H), lambda i: (0, 0)),             # W1 (next half)
            pl.BlockSpec((1, H), lambda i: (0, 0)),             # b1
            pl.BlockSpec((H, _HEAD_PAD), lambda i: (0, 0)),     # W2 (padded)
            pl.BlockSpec((1, _HEAD_PAD), lambda i: (0, 0)),     # b2 (padded)
        ],
        out_specs=pl.BlockSpec((B, _HEAD_PAD), lambda i: (0, 0)),
        out_shape=jax.ShapeDtypeStruct((B, _HEAD_PAD), jnp.float32),
        compiler_params=pltpu.CompilerParams(
            dimension_semantics=("arbitrary",)),
    )(x_cur, x_next, prepped["w1c"], prepped["w1n"], prepped["b1"],
      prepped["w2"], prepped["b2"])

    return out_padded[:, :A]


# ---------------------------------------------------------------------------
# Pure-JAX reference (mirrors the PyTorch forward exactly) for a sanity check.
# ---------------------------------------------------------------------------
def _reference_forward(params, x_cur, x_next):
    w1, b1 = params["fc1"]
    w2, b2 = params["fc2"]
    x = jnp.concatenate([x_cur, x_next], axis=1)
    h = jnp.maximum(
        jnp.dot(x, w1.T, precision=jax.lax.Precision.HIGHEST) + b1, 0.0)
    logits = jnp.dot(h, w2.T, precision=jax.lax.Precision.HIGHEST) + b2
    return jax.nn.softmax(logits, axis=1)


if __name__ == "__main__":
    num_features, num_actions = 288, 6
    B = 2
    key = jax.random.PRNGKey(0)
    k_xc, k_xn, k_p = jax.random.split(key, 3)

    x_cur = jax.random.normal(k_xc, (B, num_features), jnp.float32)
    x_next = jax.random.normal(k_xn, (B, num_features), jnp.float32)

    params = init_params(k_p, num_features, num_actions)
    prepped = prepare_params(params)

    probs = inverse_model_forward(prepped, x_cur, x_next)
    probs = jax.block_until_ready(probs)

    assert probs.shape == (B, num_actions) and probs.dtype == jnp.float32
    # Rows of a softmax must sum to 1.
    assert bool(jnp.all(jnp.abs(jnp.sum(probs, axis=1) - 1.0) < 1e-5))
    # Match the PyTorch-semantics reference.
    ref = jax.block_until_ready(_reference_forward(params, x_cur, x_next))
    assert bool(jnp.all(jnp.abs(probs - ref) < 1e-4))

    print("KERNEL_OK")
</pallas_src>

<mosaic_0001>
module attributes {stable_mosaic.version = 11 : i64} {
  func.func @_inverse_model_kernel(%arg0: i32, %arg1: memref<2x288xf32, #tpu.memory_space<vmem>>, %arg2: memref<2x288xf32, #tpu.memory_space<vmem>>, %arg3: memref<288x256xf32, #tpu.memory_space<vmem>>, %arg4: memref<288x256xf32, #tpu.memory_space<vmem>>, %arg5: memref<1x256xf32, #tpu.memory_space<vmem>>, %arg6: memref<256x128xf32, #tpu.memory_space<vmem>>, %arg7: memref<1x128xf32, #tpu.memory_space<vmem>>, %arg8: memref<2x128xf32, #tpu.memory_space<vmem>>) attributes {dimension_semantics = [#tpu.dimension_semantics<arbitrary>], iteration_bounds = array<i64: 1>, scalar_prefetch = 0 : i64, scratch_operands = 0 : i64, tpu.core_type = #tpu.core_type<tc>, window_params = [{pipeline_mode = #tpu.pipeline_mode<synchronous>, transform_indices = @transform_0, window_bounds = array<i64: 2, 288>}, {pipeline_mode = #tpu.pipeline_mode<synchronous>, transform_indices = @transform_1, window_bounds = array<i64: 2, 288>}, {pipeline_mode = #tpu.pipeline_mode<synchronous>, transform_indices = @transform_2, window_bounds = array<i64: 288, 256>}, {pipeline_mode = #tpu.pipeline_mode<synchronous>, transform_indices = @transform_3, window_bounds = array<i64: 288, 256>}, {pipeline_mode = #tpu.pipeline_mode<synchronous>, transform_indices = @transform_4, window_bounds = array<i64: 1, 256>}, {pipeline_mode = #tpu.pipeline_mode<synchronous>, transform_indices = @transform_5, window_bounds = array<i64: 256, 128>}, {pipeline_mode = #tpu.pipeline_mode<synchronous>, transform_indices = @transform_6, window_bounds = array<i64: 1, 128>}, {pipeline_mode = #tpu.pipeline_mode<synchronous>, transform_indices = @transform_7, window_bounds = array<i64: 2, 128>}]} {
    %c0 = arith.constant 0 : index
    %c0_0 = arith.constant 0 : index
    %0 = vector.load %arg1[%c0, %c0_0] : memref<2x288xf32, #tpu.memory_space<vmem>>, vector<2x288xf32>
    %c0_1 = arith.constant 0 : index
    %c0_2 = arith.constant 0 : index
    %1 = vector.load %arg3[%c0_1, %c0_2] : memref<288x256xf32, #tpu.memory_space<vmem>>, vector<288x256xf32>
    %cst = arith.constant dense<0.000000e+00> : vector<2x256xf32>
    %2 = tpu.matmul %0, %1, %cst {dimension_numbers = #tpu.dot_dimension_numbers<[1], [0], [0], [1], [0, 0, 1, 1], [], []>} : vector<2x288xf32>, vector<288x256xf32>, vector<2x256xf32> -> vector<2x256xf32>
    %c0_3 = arith.constant 0 : index
    %c0_4 = arith.constant 0 : index
    %3 = vector.load %arg2[%c0_3, %c0_4] : memref<2x288xf32, #tpu.memory_space<vmem>>, vector<2x288xf32>
    %c0_5 = arith.constant 0 : index
    %c0_6 = arith.constant 0 : index
    %4 = vector.load %arg4[%c0_5, %c0_6] : memref<288x256xf32, #tpu.memory_space<vmem>>, vector<288x256xf32>
    %cst_7 = arith.constant dense<0.000000e+00> : vector<2x256xf32>
    %5 = tpu.matmul %3, %4, %cst_7 {dimension_numbers = #tpu.dot_dimension_numbers<[1], [0], [0], [1], [0, 0, 1, 1], [], []>} : vector<2x288xf32>, vector<288x256xf32>, vector<2x256xf32> -> vector<2x256xf32>
    %6 = arith.addf %2, %5 : vector<2x256xf32>
    %c0_8 = arith.constant 0 : index
    %c0_9 = arith.constant 0 : index
    %7 = vector.load %arg5[%c0_8, %c0_9] : memref<1x256xf32, #tpu.memory_space<vmem>>, vector<1x256xf32>
    %8 = vector.broadcast %7 : vector<1x256xf32> to vector<2x256xf32>
    %9 = arith.addf %6, %8 : vector<2x256xf32>
    %cst_10 = arith.constant 0.000000e+00 : f32
    %10 = vector.broadcast %cst_10 : f32 to vector<2x256xf32>
    %11 = arith.maximumf %9, %10 : vector<2x256xf32>
    %c0_11 = arith.constant 0 : index
    %c0_12 = arith.constant 0 : index
    %12 = vector.load %arg6[%c0_11, %c0_12] : memref<256x128xf32, #tpu.memory_space<vmem>>, vector<256x128xf32>
    %cst_13 = arith.constant dense<0.000000e+00> : vector<2x128xf32>
    %13 = tpu.matmul %11, %12, %cst_13 {dimension_numbers = #tpu.dot_dimension_numbers<[1], [0], [0], [1], [0, 0, 1, 1], [], []>} : vector<2x256xf32>, vector<256x128xf32>, vector<2x128xf32> -> vector<2x128xf32>
    %c0_14 = arith.constant 0 : index
    %c0_15 = arith.constant 0 : index
    %14 = vector.load %arg7[%c0_14, %c0_15] : memref<1x128xf32, #tpu.memory_space<vmem>>, vector<1x128xf32>
    %15 = vector.broadcast %14 : vector<1x128xf32> to vector<2x128xf32>
    %16 = arith.addf %13, %15 : vector<2x128xf32>
    %cst_16 = arith.constant dense<0xFF800000> : vector<2xf32>
    %17 = vector.multi_reduction <maximumf>, %16, %cst_16 [1] : vector<2x128xf32> to vector<2xf32>
    %18 = vector.shape_cast %17 : vector<2xf32> to vector<2x1xf32>
    %19 = vector.broadcast %18 : vector<2x1xf32> to vector<2x128xf32>
    %20 = arith.subf %16, %19 : vector<2x128xf32>
    %21 = math.exp %20 : vector<2x128xf32>
    %cst_17 = arith.constant dense<0.000000e+00> : vector<2xf32>
    %22 = vector.multi_reduction <add>, %21, %cst_17 [1] : vector<2x128xf32> to vector<2xf32>
    %23 = vector.shape_cast %22 : vector<2xf32> to vector<2x1xf32>
    %24 = vector.broadcast %23 : vector<2x1xf32> to vector<2x128xf32>
    %25 = arith.divf %21, %24 : vector<2x128xf32>
    %c0_18 = arith.constant 0 : index
    %c0_19 = arith.constant 0 : index
    %26 = vector.load %arg8[%c0_18, %c0_19] : memref<2x128xf32, #tpu.memory_space<vmem>>, vector<2x128xf32>
    tpu.vector_store %arg8[%c0_18, %c0_19], %25 {strides = array<i32>} : memref<2x128xf32, #tpu.memory_space<vmem>>, vector<2x128xf32>,
    return
  }
  func.func @transform_0(%arg0: i32) -> (i32, i32) {
    %c0_i32 = arith.constant 0 : i32
    %c0_i32_0 = arith.constant 0 : i32
    %c0_i32_1 = arith.constant 0 : i32
    return %c0_i32, %c0_i32_0 : i32, i32
  }
  func.func @transform_1(%arg0: i32) -> (i32, i32) {
    %c0_i32 = arith.constant 0 : i32
    %c0_i32_0 = arith.constant 0 : i32
    %c0_i32_1 = arith.constant 0 : i32
    return %c0_i32, %c0_i32_0 : i32, i32
  }
  func.func @transform_2(%arg0: i32) -> (i32, i32) {
    %c0_i32 = arith.constant 0 : i32
    %c0_i32_0 = arith.constant 0 : i32
    %c0_i32_1 = arith.constant 0 : i32
    return %c0_i32, %c0_i32_0 : i32, i32
  }
  func.func @transform_3(%arg0: i32) -> (i32, i32) {
    %c0_i32 = arith.constant 0 : i32
    %c0_i32_0 = arith.constant 0 : i32
    %c0_i32_1 = arith.constant 0 : i32
    return %c0_i32, %c0_i32_0 : i32, i32
  }
  func.func @transform_4(%arg0: i32) -> (i32, i32) {
    %c0_i32 = arith.constant 0 : i32
    %c0_i32_0 = arith.constant 0 : i32
    %c0_i32_1 = arith.constant 0 : i32
    return %c0_i32, %c0_i32_0 : i32, i32
  }
  func.func @transform_5(%arg0: i32) -> (i32, i32) {
    %c0_i32 = arith.constant 0 : i32
    %c0_i32_0 = arith.constant 0 : i32
    %c0_i32_1 = arith.constant 0 : i32
    return %c0_i32, %c0_i32_0 : i32, i32
  }
  func.func @transform_6(%arg0: i32) -> (i32, i32) {
    %c0_i32 = arith.constant 0 : i32
    %c0_i32_0 = arith.constant 0 : i32
    %c0_i32_1 = arith.constant 0 : i32
    return %c0_i32, %c0_i32_0 : i32, i32
  }
  func.func @transform_7(%arg0: i32) -> (i32, i32) {
    %c0_i32 = arith.constant 0 : i32
    %c0_i32_0 = arith.constant 0 : i32
    %c0_i32_1 = arith.constant 0 : i32
    return %c0_i32, %c0_i32_0 : i32, i32
  }
}

</mosaic_0001>

<llo_original>
// kernel: tpu_custom_call.1
$region0: #{tpu_custom_call.1}
  #allocation0 [shape = 'u32[]', space=smem, size = 0x4, offset = 0x4, fixed_abs, tag = 'smem constant byte address 0x4 - core index']
  #allocation1 [shape = 'u32[144,128]{1,0:T(1,128)}', space=vmem, size = 0x12000, scoped, tag = 'internal scratch']
  %s0 = inlined_call_operand.hbm [shape: f32[2,288], index: 0, kind: input, shape index: {}]
  %s1 = inlined_call_operand.hbm [shape: f32[2,288], index: 1, kind: input, shape index: {}]
  %s2 = inlined_call_operand.hbm [shape: f32[288,256], index: 2, kind: input, shape index: {}]
  %s3 = inlined_call_operand.hbm [shape: f32[288,256], index: 3, kind: input, shape index: {}]
  %s4 = inlined_call_operand.vmem [shape: f32[1,256], index: 4, kind: input, shape index: {}]
  %s5 = inlined_call_operand.hbm [shape: f32[256,128], index: 5, kind: input, shape index: {}]
  %s6 = inlined_call_operand.vmem [shape: f32[1,128], index: 6, kind: input, shape index: {}]
  %s7 = inlined_call_operand.hbm [shape: f32[2,128], index: 7, kind: output, shape index: {}]
  %s8 = sld [smem:[#allocation0]]
  $region58: #{tpu_custom_call.1} parent=0
    _
  %s10 = ssub.s32 1, %s8
  %s11 = scalar_select 0, %s10, %s8
  $region1: #{tpu_custom_call.1} parent=0
    #allocation2 [shape = 'u8[3072]{0}', space=vmem, size = 0xc00, scoped, tag = 'input window, operand 0, single buffered']
    #allocation3 [shape = 's32[1]{0}', space=sflag, size = 0x4, scoped, tag = 'scoped memory for tpu_custom_call.1']
    #allocation4 [shape = 's32[1]{0}', space=sflag, size = 0x4, scoped, tag = 'scoped memory for tpu_custom_call.1']
    #allocation5 [shape = 'u8[3072]{0}', space=vmem, size = 0xc00, scoped, tag = 'input window, operand 1, single buffered']
    #allocation6 [shape = 's32[1]{0}', space=sflag, size = 0x4, scoped, tag = 'scoped memory for tpu_custom_call.1']
    #allocation7 [shape = 'u8[294912]{0}', space=vmem, size = 0x48000, scoped, tag = 'input window, operand 2, single buffered']
    #allocation8 [shape = 'u8[294912]{0}', space=vmem, size = 0x48000, scoped, tag = 'input window, operand 3, single buffered']
    #allocation9 [shape = 's32[1]{0}', space=sflag, size = 0x4, scoped, tag = 'scoped memory for tpu_custom_call.1']
    #allocation10 [shape = 'u8[131072]{0}', space=vmem, size = 0x20000, scoped, tag = 'input window, operand 5, single buffered']
    #allocation11 [shape = 'u8[1024]{0}', space=vmem, size = 0x400, scoped, tag = 'output window, operand 0, single buffered']
    %12 = vsyncpa [#allocation3], 0
    %13 = vsyncpa [#allocation6], 0
    %14 = vsyncpa [#allocation9], 0
    %15 = vsyncpa [#allocation4], 0
    // Predicated region
    $region2: #{tpu_custom_call.1} parent=1 // pred_check
      _
    $region3: #{tpu_custom_call.1} parent=1 // pred_check_branch
      %17 = sbr.rel (0) target = $region5
    $region4: #{tpu_custom_call.1} parent=1 // pred_region
      %s19 = ssub.s32 96, 96
      %20 = vsyncadd [#allocation3], %s19
      %s22 = sshll.u32 [#allocation2], 4
      %s23 = int_to_ptr.vmem [resolvable:$true] %s22
      %25 = dma.hbm_to_vmem [thread:$0]  %s0, 96, %s23, [#allocation3]
    $region5: #{tpu_custom_call.1} parent=1 // pred_fallthru
      _
    // Predicated region
    $region6: #{tpu_custom_call.1} parent=1 // pred_check
      _
    $region7: #{tpu_custom_call.1} parent=1 // pred_check_branch
      %27 = sbr.rel (0) target = $region9
    $region8: #{tpu_custom_call.1} parent=1 // pred_region
      %s29 = ssub.s32 96, 96
      %30 = vsyncadd [#allocation6], %s29
      %s32 = sshll.u32 [#allocation5], 4
      %s33 = int_to_ptr.vmem [resolvable:$true] %s32
      %35 = dma.hbm_to_vmem [thread:$0]  %s1, 96, %s33, [#allocation6]
    $region9: #{tpu_custom_call.1} parent=1 // pred_fallthru
      _
    // Predicated region
    $region10: #{tpu_custom_call.1} parent=1 // pred_check
      _
    $region11: #{tpu_custom_call.1} parent=1 // pred_check_branch
      %37 = sbr.rel (0) target = $region13
    $region12: #{tpu_custom_call.1} parent=1 // pred_region
      %s39 = ssub.s32 9216, 9216
      %40 = vsyncadd [#allocation6], %s39
      %s41 = sshll.u32 [#allocation7], 4
      %s42 = int_to_ptr.vmem [resolvable:$true] %s41
      %47 = dma.hbm_to_vmem [thread:$0]  %s2, 9216, %s42, [#allocation6], 256, 256, 16
    $region13: #{tpu_custom_call.1} parent=1 // pred_fallthru
      _
    // Predicated region
    $region14: #{tpu_custom_call.1} parent=1 // pred_check
      _
    $region15: #{tpu_custom_call.1} parent=1 // pred_check_branch
      %49 = sbr.rel (0) target = $region17
    $region16: #{tpu_custom_call.1} parent=1 // pred_region
      %s51 = ssub.s32 9216, 9216
      %52 = vsyncadd [#allocation9], %s51
      %s53 = sshll.u32 [#allocation8], 4
      %s54 = int_to_ptr.vmem [resolvable:$true] %s53
      %59 = dma.hbm_to_vmem [thread:$0]  %s3, 9216, %s54, [#allocation9], 256, 256, 16
    $region17: #{tpu_custom_call.1} parent=1 // pred_fallthru
      _
    // Predicated region
    $region18: #{tpu_custom_call.1} parent=1 // pred_check
      _
    $region19: #{tpu_custom_call.1} parent=1 // pred_check_branch
      %61 = sbr.rel (0) target = $region21
    $region20: #{tpu_custom_call.1} parent=1 // pred_region
      _
    $region21: #{tpu_custom_call.1} parent=1 // pred_fallthru
      _
    // Predicated region
    $region22: #{tpu_custom_call.1} parent=1 // pred_check
      _
    $region23: #{tpu_custom_call.1} parent=1 // pred_check_branch
      %63 = sbr.rel (0) target = $region25
    $region24: #{tpu_custom_call.1} parent=1 // pred_region
      %s65 = ssub.s32 4096, 4096
      %66 = vsyncadd [#allocation9], %s65
      %s67 = sshll.u32 [#allocation10], 4
      %s68 = int_to_ptr.vmem [resolvable:$true] %s67
      %73 = dma.hbm_to_vmem [thread:$0]  %s5, 4096, %s68, [#allocation9], 128, 128, 8
    $region25: #{tpu_custom_call.1} parent=1 // pred_fallthru
      _
    // Predicated region
    $region26: #{tpu_custom_call.1} parent=1 // pred_check
      _
    $region27: #{tpu_custom_call.1} parent=1 // pred_check_branch
      %75 = sbr.rel (0) target = $region29
    $region28: #{tpu_custom_call.1} parent=1 // pred_region
      _
    $region29: #{tpu_custom_call.1} parent=1 // pred_fallthru
      _
    // Predicated region
    $region30: #{tpu_custom_call.1} parent=1 // pred_check
      _
    $region31: #{tpu_custom_call.1} parent=1 // pred_check_branch
      %77 = sbr.rel (0) target = $region33
    $region32: #{tpu_custom_call.1} parent=1 // pred_region
      %78 = dma.done [#allocation3], 96
    $region33: #{tpu_custom_call.1} parent=1 // pred_fallthru
      _
    // Predicated region
    $region34: #{tpu_custom_call.1} parent=1 // pred_check
      _
    $region35: #{tpu_custom_call.1} parent=1 // pred_check_branch
      %80 = sbr.rel (0) target = $region37
    $region36: #{tpu_custom_call.1} parent=1 // pred_region
      %81 = dma.done [#allocation6], 96
    $region37: #{tpu_custom_call.1} parent=1 // pred_fallthru
      _
    // Predicated region
    $region38: #{tpu_custom_call.1} parent=1 // pred_check
      _
    $region39: #{tpu_custom_call.1} parent=1 // pred_check_branch
      %83 = sbr.rel (0) target = $region41
    $region40: #{tpu_custom_call.1} parent=1 // pred_region
      %84 = dma.done [#allocation6], 9216
    $region41: #{tpu_custom_call.1} parent=1 // pred_fallthru
      _
    // Predicated region
    $region42: #{tpu_custom_call.1} parent=1 // pred_check
      _
    $region43: #{tpu_custom_call.1} parent=1 // pred_check_branch
      %86 = sbr.rel (0) target = $region45
    $region44: #{tpu_custom_call.1} parent=1 // pred_region
      %87 = dma.done [#allocation9], 9216
    $region45: #{tpu_custom_call.1} parent=1 // pred_fallthru
      _
    // Predicated region
    $region46: #{tpu_custom_call.1} parent=1 // pred_check
      _
    $region47: #{tpu_custom_call.1} parent=1 // pred_check_branch
      %89 = sbr.rel (0) target = $region49
    $region48: #{tpu_custom_call.1} parent=1 // pred_region
      %90 = dma.done [#allocation9], 4096
    $region49: #{tpu_custom_call.1} parent=1 // pred_fallthru
      _
    %v91 = vld [vmem:[#allocation2] sm:$0x3f]
    %v92 = vld [vmem:[#allocation7] sm:$0xff]
    %v93 = vld [vmem:[#allocation7 + $0x8] sm:$0xff]
    %v94 = vld [vmem:[#allocation7 + $0x10] sm:$0xff]
    %v95 = vld [vmem:[#allocation7 + $0x18] sm:$0xff]
    %v96 = vld [vmem:[#allocation7 + $0x20] sm:$0xff]
    %v97 = vld [vmem:[#allocation7 + $0x28] sm:$0xff]
    %v98 = vld [vmem:[#allocation7 + $0x30] sm:$0xff]
    %v99 = vld [vmem:[#allocation7 + $0x38] sm:$0xff]
    %v100 = vld [vmem:[#allocation7 + $0x40] sm:$0xff]
    %v101 = vld [vmem:[#allocation7 + $0x48] sm:$0xff]
    %v102 = vld [vmem:[#allocation7 + $0x50] sm:$0xff]
    %v103 = vld [vmem:[#allocation7 + $0x58] sm:$0xff]
    %v104 = vld [vmem:[#allocation7 + $0x60] sm:$0xff]
    %v105 = vld [vmem:[#allocation7 + $0x68] sm:$0xff]
    %v106 = vld [vmem:[#allocation7 + $0x70] sm:$0xff]
    %v107 = vld [vmem:[#allocation7 + $0x78] sm:$0xff]
    %v108 = vld [vmem:[#allocation7 + $0x80] sm:$0xff]
    %v109 = vld [vmem:[#allocation7 + $0x88] sm:$0xff]
    %v110 = vld [vmem:[#allocation7 + $0x90] sm:$0xff]
    %v111 = vld [vmem:[#allocation7 + $0x98] sm:$0xff]
    %v112 = vld [vmem:[#allocation7 + $0xa0] sm:$0xff]
    %v113 = vld [vmem:[#allocation7 + $0xa8] sm:$0xff]
    %v114 = vld [vmem:[#allocation7 + $0xb0] sm:$0xff]
    %v115 = vld [vmem:[#allocation7 + $0xb8] sm:$0xff]
    %v116 = vld [vmem:[#allocation7 + $0xc0] sm:$0xff]
    %v117 = vld [vmem:[#allocation7 + $0xc8] sm:$0xff]
    %v118 = vld [vmem:[#allocation7 + $0xd0] sm:$0xff]
    %v119 = vld [vmem:[#allocation7 + $0xd8] sm:$0xff]
    %v120 = vld [vmem:[#allocation7 + $0xe0] sm:$0xff]
    %v121 = vld [vmem:[#allocation7 + $0xe8] sm:$0xff]
    %v122 = vld [vmem:[#allocation7 + $0xf0] sm:$0xff]
    %v123 = vld [vmem:[#allocation7 + $0xf8] sm:$0xff]
    %v124 = vld [vmem:[#allocation7 + $0x100] sm:$0xff]
    %v125 = vld [vmem:[#allocation7 + $0x108] sm:$0xff]
    %v126 = vld [vmem:[#allocation7 + $0x110] sm:$0xff]
    %v127 = vld [vmem:[#allocation7 + $0x118] sm:$0xff]
    %v128 = vld [vmem:[#allocation7 + $0x120] sm:$0xff]
    %v129 = vld [vmem:[#allocation7 + $0x128] sm:$0xff]
    %v130 = vld [vmem:[#allocation7 + $0x130] sm:$0xff]
    %v131 = vld [vmem:[#allocation7 + $0x138] sm:$0xff]
    %v132 = vld [vmem:[#allocation7 + $0x140] sm:$0xff]
    %v133 = vld [vmem:[#allocation7 + $0x148] sm:$0xff]
    %v134 = vld [vmem:[#allocation7 + $0x150] sm:$0xff]
    %v135 = vld [vmem:[#allocation7 + $0x158] sm:$0xff]
    %v136 = vld [vmem:[#allocation7 + $0x160] sm:$0xff]
    %v137 = vld [vmem:[#allocation7 + $0x168] sm:$0xff]
    %v138 = vld [vmem:[#allocation7 + $0x170] sm:$0xff]
    %v139 = vld [vmem:[#allocation7 + $0x178] sm:$0xff]
    %v140 = vld [vmem:[#allocation7 + $0x180] sm:$0xff]
    %v141 = vld [vmem:[#allocation7 + $0x188] sm:$0xff]
    %v142 = vld [vmem:[#allocation7 + $0x190] sm:$0xff]
    %v143 = vld [vmem:[#allocation7 + $0x198] sm:$0xff]
    %v144 = vld [vmem:[#allocation7 + $0x1a0] sm:$0xff]
    %v145 = vld [vmem:[#allocation7 + $0x1a8] sm:$0xff]
    %v146 = vld [vmem:[#allocation7 + $0x1b0] sm:$0xff]
    %v147 = vld [vmem:[#allocation7 + $0x1b8] sm:$0xff]
    %v148 = vld [vmem:[#allocation7 + $0x1c0] sm:$0xff]
    %v149 = vld [vmem:[#allocation7 + $0x1c8] sm:$0xff]
    %v150 = vld [vmem:[#allocation7 + $0x1d0] sm:$0xff]
    %v151 = vld [vmem:[#allocation7 + $0x1d8] sm:$0xff]
    %v152 = vld [vmem:[#allocation7 + $0x1e0] sm:$0xff]
    %v153 = vld [vmem:[#allocation7 + $0x1e8] sm:$0xff]
    %v154 = vld [vmem:[#allocation7 + $0x1f0] sm:$0xff]
    %v155 = vld [vmem:[#allocation7 + $0x1f8] sm:$0xff]
    %v156 = vld [vmem:[#allocation7 + $0x200] sm:$0xff]
    %v157 = vld [vmem:[#allocation7 + $0x208] sm:$0xff]
    %v158 = vld [vmem:[#allocation7 + $0x210] sm:$0xff]
    %v159 = vld [vmem:[#allocation7 + $0x218] sm:$0xff]
    %v160 = vld [vmem:[#allocation7 + $0x220] sm:$0xff]
    %v161 = vld [vmem:[#allocation7 + $0x228] sm:$0xff]
    %v162 = vld [vmem:[#allocation7 + $0x230] sm:$0xff]
    %v163 = vld [vmem:[#allocation7 + $0x238] sm:$0xff]
    %v164 = vld [vmem:[#allocation5] sm:$0x3f]
    %v165 = vld [vmem:[#allocation8] sm:$0xff]
    %v166 = vld [vmem:[#allocation8 + $0x8] sm:$0xff]
    %v167 = vld [vmem:[#allocation8 + $0x10] sm:$0xff]
    %v168 = vld [vmem:[#allocation8 + $0x18] sm:$0xff]
    %v169 = vld [vmem:[#allocation8 + $0x20] sm:$0xff]
    %v170 = vld [vmem:[#allocation8 + $0x28] sm:$0xff]
    %v171 = vld [vmem:[#allocation8 + $0x30] sm:$0xff]
    %v172 = vld [vmem:[#allocation8 + $0x38] sm:$0xff]
    %v173 = vld [vmem:[#allocation8 + $0x40] sm:$0xff]
    %v174 = vld [vmem:[#allocation8 + $0x48] sm:$0xff]
    %v175 = vld [vmem:[#allocation8 + $0x50] sm:$0xff]
    %v176 = vld [vmem:[#allocation8 + $0x58] sm:$0xff]
    %v177 = vld [vmem:[#allocation8 + $0x60] sm:$0xff]
    %v178 = vld [vmem:[#allocation8 + $0x68] sm:$0xff]
    %v179 = vld [vmem:[#allocation8 + $0x70] sm:$0xff]
    %v180 = vld [vmem:[#allocation8 + $0x78] sm:$0xff]
    %v181 = vld [vmem:[#allocation8 + $0x80] sm:$0xff]
    %v182 = vld [vmem:[#allocation8 + $0x88] sm:$0xff]
    %v183 = vld [vmem:[#allocation8 + $0x90] sm:$0xff]
    %v184 = vld [vmem:[#allocation8 + $0x98] sm:$0xff]
    %v185 = vld [vmem:[#allocation8 + $0xa0] sm:$0xff]
    %v186 = vld [vmem:[#allocation8 + $0xa8] sm:$0xff]
    %v187 = vld [vmem:[#allocation8 + $0xb0] sm:$0xff]
    %v188 = vld [vmem:[#allocation8 + $0xb8] sm:$0xff]
    %v189 = vld [vmem:[#allocation8 + $0xc0] sm:$0xff]
    %v190 = vld [vmem:[#allocation8 + $0xc8] sm:$0xff]
    %v191 = vld [vmem:[#allocation8 + $0xd0] sm:$0xff]
    %v192 = vld [vmem:[#allocation8 + $0xd8] sm:$0xff]
    %v193 = vld [vmem:[#allocation8 + $0xe0] sm:$0xff]
    %v194 = vld [vmem:[#allocation8 + $0xe8] sm:$0xff]
    %v195 = vld [vmem:[#allocation8 + $0xf0] sm:$0xff]
    %v196 = vld [vmem:[#allocation8 + $0xf8] sm:$0xff]
    %v197 = vld [vmem:[#allocation8 + $0x100] sm:$0xff]
    %v198 = vld [vmem:[#allocation8 + $0x108] sm:$0xff]
    %v199 = vld [vmem:[#allocation8 + $0x110] sm:$0xff]
    %v200 = vld [vmem:[#allocation8 + $0x118] sm:$0xff]
    %v201 = vld [vmem:[#allocation8 + $0x120] sm:$0xff]
    %v202 = vld [vmem:[#allocation8 + $0x128] sm:$0xff]
    %v203 = vld [vmem:[#allocation8 + $0x130] sm:$0xff]
    %v204 = vld [vmem:[#allocation8 + $0x138] sm:$0xff]
    %v205 = vld [vmem:[#allocation8 + $0x140] sm:$0xff]
    %v206 = vld [vmem:[#allocation8 + $0x148] sm:$0xff]
    %v207 = vld [vmem:[#allocation8 + $0x150] sm:$0xff]
    %v208 = vld [vmem:[#allocation8 + $0x158] sm:$0xff]
    %v209 = vld [vmem:[#allocation8 + $0x160] sm:$0xff]
    %v210 = vld [vmem:[#allocation8 + $0x168] sm:$0xff]
    %v211 = vld [vmem:[#allocation8 + $0x170] sm:$0xff]
    %v212 = vld [vmem:[#allocation8 + $0x178] sm:$0xff]
    %v213 = vld [vmem:[#allocation8 + $0x180] sm:$0xff]
    %v214 = vld [vmem:[#allocation8 + $0x188] sm:$0xff]
    %v215 = vld [vmem:[#allocation8 + $0x190] sm:$0xff]
    %v216 = vld [vmem:[#allocation8 + $0x198] sm:$0xff]
    %v217 = vld [vmem:[#allocation8 + $0x1a0] sm:$0xff]
    %v218 = vld [vmem:[#allocation8 + $0x1a8] sm:$0xff]
    %v219 = vld [vmem:[#allocation8 + $0x1b0] sm:$0xff]
    %v220 = vld [vmem:[#allocation8 + $0x1b8] sm:$0xff]
    %v221 = vld [vmem:[#allocation8 + $0x1c0] sm:$0xff]
    %v222 = vld [vmem:[#allocation8 + $0x1c8] sm:$0xff]
    %v223 = vld [vmem:[#allocation8 + $0x1d0] sm:$0xff]
    %v224 = vld [vmem:[#allocation8 + $0x1d8] sm:$0xff]
    %v225 = vld [vmem:[#allocation8 + $0x1e0] sm:$0xff]
    %v226 = vld [vmem:[#allocation8 + $0x1e8] sm:$0xff]
    %v227 = vld [vmem:[#allocation8 + $0x1f0] sm:$0xff]
    %v228 = vld [vmem:[#allocation8 + $0x1f8] sm:$0xff]
    %v229 = vld [vmem:[#allocation8 + $0x200] sm:$0xff]
    %v230 = vld [vmem:[#allocation8 + $0x208] sm:$0xff]
    %v231 = vld [vmem:[#allocation8 + $0x210] sm:$0xff]
    %v232 = vld [vmem:[#allocation8 + $0x218] sm:$0xff]
    %v233 = vld [vmem:[#allocation8 + $0x220] sm:$0xff]
    %v234 = vld [vmem:[#allocation8 + $0x228] sm:$0xff]
    %v235 = vld [vmem:[#allocation8 + $0x230] sm:$0xff]
    %v236 = vld [vmem:[#allocation8 + $0x238] sm:$0xff]
    %v238 = vcombine.high %v164, %v164
    %v240 = vunpack.c.l.s4 1983009808
    %v241 = vunpack.c.0.s8 %v240
    %v242 = vlaneseq
    %v243 = vshrl.u32 %v242, 7
    %v244 = vsub.s32 %v241, %v243
    %v245 = vrot.slane %v164, %v244
    %v247 = vunpack.c.l.s4 1983009808
    %v248 = vunpack.c.0.s8 %v247
    %v249 = vlaneseq
    %v250 = vshrl.u32 %v249, 7
    %v251 = vsub.s32 %v248, %v250
    %v252 = vrot.slane %v238, %v251
    %v253 = vcombine.high %v245, %v245
    %vm256 = vcmask 261120
    %v257 = vsel %vm256, %v252, 0
    %259 = vmatprep.subr.mxu0 %v196
    %260 = vmatpush1.msra.mxu0 %v195
    %261 = vmatprep.subr.mxu0 %v194
    %262 = vmatpush1.msra.mxu0 %v193
    %263 = vmatprep.subr.mxu0 %v192
    %264 = vmatpush1.msra.mxu0 %v191
    %265 = vmatprep.subr.mxu0 %v190
    %266 = vmatpush1.msra.mxu0 %v189
    %267 = vmatprep.subr.mxu0 %v188
    %268 = vmatpush1.msra.mxu0 %v187
    %269 = vmatprep.subr.mxu0 %v186
    %270 = vmatpush1.msra.mxu0 %v185
    %271 = vmatprep.subr.mxu0 %v184
    %272 = vmatpush1.msra.mxu0 %v183
    %273 = vmatprep.subr.mxu0 %v182
    %274 = vmatpush1.msra.mxu0 %v181
    %275 = vmatprep.subr.mxu0 %v180
    %276 = vmatpush1.msra.mxu0 %v179
    %277 = vmatprep.subr.mxu0 %v178
    %278 = vmatpush1.msra.mxu0 %v177
    %279 = vmatprep.subr.mxu0 %v176
    %280 = vmatpush1.msra.mxu0 %v175
    %281 = vmatprep.subr.mxu0 %v174
    %282 = vmatpush1.msra.mxu0 %v173
    %283 = vmatprep.subr.mxu0 %v172
    %284 = vmatpush1.msra.mxu0 %v171
    %285 = vmatprep.subr.mxu0 %v170
    %286 = vmatpush1.msra.mxu0 %v169
    %287 = vmatprep.subr.mxu0 %v168
    %288 = vmatpush1.msra.mxu0 %v167
    %289 = vmatprep.subr.mxu0 %v166
    %290 = vmatpush1.msra.mxu0 %v165
    %291 = vmatprep.subr.mxu0 %v228
    %292 = vmatpush2.msra.mxu0 %v227
    %293 = vmatprep.subr.mxu0 %v226
    %294 = vmatpush2.msra.mxu0 %v225
    %295 = vmatprep.subr.mxu0 %v224
    %296 = vmatpush2.msra.mxu0 %v223
    %297 = vmatprep.subr.mxu0 %v222
    %298 = vmatpush2.msra.mxu0 %v221
    %299 = vmatprep.subr.mxu0 %v220
    %300 = vmatpush2.msra.mxu0 %v219
    %301 = vmatprep.subr.mxu0 %v218
    %302 = vmatpush2.msra.mxu0 %v217
    %303 = vmatprep.subr.mxu0 %v216
    %304 = vmatpush2.msra.mxu0 %v215
    %305 = vmatprep.subr.mxu0 %v214
    %306 = vmatpush2.msra.mxu0 %v213
    %307 = vmatprep.subr.mxu0 %v212
    %308 = vmatpush2.msra.mxu0 %v211
    %309 = vmatprep.subr.mxu0 %v210
    %310 = vmatpush2.msra.mxu0 %v209
    %311 = vmatprep.subr.mxu0 %v208
    %312 = vmatpush2.msra.mxu0 %v207
    %313 = vmatprep.subr.mxu0 %v206
    %314 = vmatpush2.msra.mxu0 %v205
    %315 = vmatprep.subr.mxu0 %v204
    %316 = vmatpush2.msra.mxu0 %v203
    %317 = vmatprep.subr.mxu0 %v202
    %318 = vmatpush2.msra.mxu0 %v201
    %319 = vmatprep.subr.mxu0 %v200
    %320 = vmatpush2.msra.mxu0 %v199
    %321 = vmatprep.subr.mxu0 %v198
    %322 = vmatpush2.msra.mxu0 %v197
    %323 = vmatprep.mubr.f32.mxu0 %v253
    %324 = vmatmul.mubr.f32.gmra.mxu0 %v245
    %v325 = vpop.f32.mrf.mxu0
    %v326 = vadd.f32 0.0, %v325
    %v327 = vpop.f32.mrf.mxu0
    %v328 = vadd.f32 0.0, %v327
    %329 = vdwg.mxu0
    %330 = vmatprep.subr.mxu0 0.0
    %331 = vmatpush1.msra.mxu0 0.0
    %332 = vmatprep.subr.mxu0 0.0
    %333 = vmatpush1.msra.mxu0 0.0
    %334 = vmatprep.subr.mxu0 0.0
    %335 = vmatpush1.msra.mxu0 0.0
    %336 = vmatprep.subr.mxu0 0.0
    %337 = vmatpush1.msra.mxu0 0.0
    %338 = vmatprep.subr.mxu0 0.0
    %339 = vmatpush1.msra.mxu0 0.0
    %340 = vmatprep.subr.mxu0 0.0
    %341 = vmatpush1.msra.mxu0 0.0
    %342 = vmatprep.subr.mxu0 0.0
    %343 = vmatpush1.msra.mxu0 0.0
    %344 = vmatprep.subr.mxu0 0.0
    %345 = vmatpush1.msra.mxu0 0.0
    %346 = vmatprep.subr.mxu0 0.0
    %347 = vmatpush1.msra.mxu0 0.0
    %348 = vmatprep.subr.mxu0 0.0
    %349 = vmatpush1.msra.mxu0 0.0
    %350 = vmatprep.subr.mxu0 0.0
    %351 = vmatpush1.msra.mxu0 0.0
    %352 = vmatprep.subr.mxu0 0.0
    %353 = vmatpush1.msra.mxu0 0.0
    %354 = vmatprep.subr.mxu0 %v236
    %355 = vmatpush1.msra.mxu0 %v235
    %356 = vmatprep.subr.mxu0 %v234
    %357 = vmatpush1.msra.mxu0 %v233
    %358 = vmatprep.subr.mxu0 %v232
    %359 = vmatpush1.msra.mxu0 %v231
    %360 = vmatprep.subr.mxu0 %v230
    %361 = vmatpush1.msra.mxu0 %v229
    %362 = vmatprep.subr.mxu0 0.0
    %363 = vmatpush2.msra.mxu0 0.0
    %364 = vmatprep.subr.mxu0 0.0
    %365 = vmatpush2.msra.mxu0 0.0
    %366 = vmatprep.subr.mxu0 0.0
    %367 = vmatpush2.msra.mxu0 0.0
    %368 = vmatprep.subr.mxu0 0.0
    %369 = vmatpush2.msra.mxu0 0.0
    %370 = vmatprep.subr.mxu0 0.0
    %371 = vmatpush2.msra.mxu0 0.0
    %372 = vmatprep.subr.mxu0 0.0
    %373 = vmatpush2.msra.mxu0 0.0
    %374 = vmatprep.subr.mxu0 0.0
    %375 = vmatpush2.msra.mxu0 0.0
    %376 = vmatprep.subr.mxu0 0.0
    %377 = vmatpush2.msra.mxu0 0.0
    %378 = vmatprep.subr.mxu0 0.0
    %379 = vmatpush2.msra.mxu0 0.0
    %380 = vmatprep.subr.mxu0 0.0
    %381 = vmatpush2.msra.mxu0 0.0
    %382 = vmatprep.subr.mxu0 0.0
    %383 = vmatpush2.msra.mxu0 0.0
    %384 = vmatprep.subr.mxu0 0.0
    %385 = vmatpush2.msra.mxu0 0.0
    %386 = vmatprep.subr.mxu0 0.0
    %387 = vmatpush2.msra.mxu0 0.0
    %388 = vmatprep.subr.mxu0 0.0
    %389 = vmatpush2.msra.mxu0 0.0
    %390 = vmatprep.subr.mxu0 0.0
    %391 = vmatpush2.msra.mxu0 0.0
    %392 = vmatprep.subr.mxu0 0.0
    %393 = vmatpush2.msra.mxu0 0.0
    %394 = vmatprep.mubr.f32.mxu0 0.0
    %395 = vmatmul.mubr.f32.gmra.mxu0 %v257
    %v396 = vpop.f32.mrf.mxu0
    %v397 = vadd.f32 %v326, %v396
    %v398 = vpop.f32.mrf.mxu0
    %v399 = vadd.f32 %v328, %v398
    %400 = vdwg.mxu0
    %v402 = vcombine.high %v91, %v91
    %v404 = vunpack.c.l.s4 1983009808
    %v405 = vunpack.c.0.s8 %v404
    %v406 = vlaneseq
    %v407 = vshrl.u32 %v406, 7
    %v408 = vsub.s32 %v405, %v407
    %v409 = vrot.slane %v91, %v408
    %v411 = vunpack.c.l.s4 1983009808
    %v412 = vunpack.c.0.s8 %v411
    %v413 = vlaneseq
    %v414 = vshrl.u32 %v413, 7
    %v415 = vsub.s32 %v412, %v414
    %v416 = vrot.slane %v402, %v415
    %v417 = vcombine.high %v409, %v409
    %v420 = vsel %vm256, %v416, 0
    %422 = vmatprep.subr.mxu0 %v123
    %423 = vmatpush1.msra.mxu0 %v122
    %424 = vmatprep.subr.mxu0 %v121
    %425 = vmatpush1.msra.mxu0 %v120
    %426 = vmatprep.subr.mxu0 %v119
    %427 = vmatpush1.msra.mxu0 %v118
    %428 = vmatprep.subr.mxu0 %v117
    %429 = vmatpush1.msra.mxu0 %v116
    %430 = vmatprep.subr.mxu0 %v115
    %431 = vmatpush1.msra.mxu0 %v114
    %432 = vmatprep.subr.mxu0 %v113
    %433 = vmatpush1.msra.mxu0 %v112
    %434 = vmatprep.subr.mxu0 %v111
    %435 = vmatpush1.msra.mxu0 %v110
    %436 = vmatprep.subr.mxu0 %v109
    %437 = vmatpush1.msra.mxu0 %v108
    %438 = vmatprep.subr.mxu0 %v107
    %439 = vmatpush1.msra.mxu0 %v106
    %440 = vmatprep.subr.mxu0 %v105
    %441 = vmatpush1.msra.mxu0 %v104
    %442 = vmatprep.subr.mxu0 %v103
    %443 = vmatpush1.msra.mxu0 %v102
    %444 = vmatprep.subr.mxu0 %v101
    %445 = vmatpush1.msra.mxu0 %v100
    %446 = vmatprep.subr.mxu0 %v99
    %447 = vmatpush1.msra.mxu0 %v98
    %448 = vmatprep.subr.mxu0 %v97
    %449 = vmatpush1.msra.mxu0 %v96
    %450 = vmatprep.subr.mxu0 %v95
    %451 = vmatpush1.msra.mxu0 %v94
    %452 = vmatprep.subr.mxu0 %v93
    %453 = vmatpush1.msra.mxu0 %v92
    %454 = vmatprep.subr.mxu0 %v155
    %455 = vmatpush2.msra.mxu0 %v154
    %456 = vmatprep.subr.mxu0 %v153
    %457 = vmatpush2.msra.mxu0 %v152
    %458 = vmatprep.subr.mxu0 %v151
    %459 = vmatpush2.msra.mxu0 %v150
    %460 = vmatprep.subr.mxu0 %v149
    %461 = vmatpush2.msra.mxu0 %v148
    %462 = vmatprep.subr.mxu0 %v147
    %463 = vmatpush2.msra.mxu0 %v146
    %464 = vmatprep.subr.mxu0 %v145
    %465 = vmatpush2.msra.mxu0 %v144
    %466 = vmatprep.subr.mxu0 %v143
    %467 = vmatpush2.msra.mxu0 %v142
    %468 = vmatprep.subr.mxu0 %v141
    %469 = vmatpush2.msra.mxu0 %v140
    %470 = vmatprep.subr.mxu0 %v139
    %471 = vmatpush2.msra.mxu0 %v138
    %472 = vmatprep.subr.mxu0 %v137
    %473 = vmatpush2.msra.mxu0 %v136
    %474 = vmatprep.subr.mxu0 %v135
    %475 = vmatpush2.msra.mxu0 %v134
    %476 = vmatprep.subr.mxu0 %v133
    %477 = vmatpush2.msra.mxu0 %v132
    %478 = vmatprep.subr.mxu0 %v131
    %479 = vmatpush2.msra.mxu0 %v130
    %480 = vmatprep.subr.mxu0 %v129
    %481 = vmatpush2.msra.mxu0 %v128
    %482 = vmatprep.subr.mxu0 %v127
    %483 = vmatpush2.msra.mxu0 %v126
    %484 = vmatprep.subr.mxu0 %v125
    %485 = vmatpush2.msra.mxu0 %v124
    %486 = vmatprep.mubr.f32.mxu0 %v417
    %487 = vmatmul.mubr.f32.gmra.mxu0 %v409
    %v488 = vpop.f32.mrf.mxu0
    %v489 = vadd.f32 %v397, %v488
    %v490 = vpop.f32.mrf.mxu0
    %v491 = vadd.f32 %v399, %v490
    %492 = vdwg.mxu0
    %493 = vmatprep.subr.mxu0 0.0
    %494 = vmatpush1.msra.mxu0 0.0
    %495 = vmatprep.subr.mxu0 0.0
    %496 = vmatpush1.msra.mxu0 0.0
    %497 = vmatprep.subr.mxu0 0.0
    %498 = vmatpush1.msra.mxu0 0.0
    %499 = vmatprep.subr.mxu0 0.0
    %500 = vmatpush1.msra.mxu0 0.0
    %501 = vmatprep.subr.mxu0 0.0
    %502 = vmatpush1.msra.mxu0 0.0
    %503 = vmatprep.subr.mxu0 0.0
    %504 = vmatpush1.msra.mxu0 0.0
    %505 = vmatprep.subr.mxu0 0.0
    %506 = vmatpush1.msra.mxu0 0.0
    %507 = vmatprep.subr.mxu0 0.0
    %508 = vmatpush1.msra.mxu0 0.0
    %509 = vmatprep.subr.mxu0 0.0
    %510 = vmatpush1.msra.mxu0 0.0
    %511 = vmatprep.subr.mxu0 0.0
    %512 = vmatpush1.msra.mxu0 0.0
    %513 = vmatprep.subr.mxu0 0.0
    %514 = vmatpush1.msra.mxu0 0.0
    %515 = vmatprep.subr.mxu0 0.0
    %516 = vmatpush1.msra.mxu0 0.0
    %517 = vmatprep.subr.mxu0 %v163
    %518 = vmatpush1.msra.mxu0 %v162
    %519 = vmatprep.subr.mxu0 %v161
    %520 = vmatpush1.msra.mxu0 %v160
    %521 = vmatprep.subr.mxu0 %v159
    %522 = vmatpush1.msra.mxu0 %v158
    %523 = vmatprep.subr.mxu0 %v157
    %524 = vmatpush1.msra.mxu0 %v156
    %525 = vmatprep.subr.mxu0 0.0
    %526 = vmatpush2.msra.mxu0 0.0
    %527 = vmatprep.subr.mxu0 0.0
    %528 = vmatpush2.msra.mxu0 0.0
    %529 = vmatprep.subr.mxu0 0.0
    %530 = vmatpush2.msra.mxu0 0.0
    %531 = vmatprep.subr.mxu0 0.0
    %532 = vmatpush2.msra.mxu0 0.0
    %533 = vmatprep.subr.mxu0 0.0
    %534 = vmatpush2.msra.mxu0 0.0
    %535 = vmatprep.subr.mxu0 0.0
    %536 = vmatpush2.msra.mxu0 0.0
    %537 = vmatprep.subr.mxu0 0.0
    %538 = vmatpush2.msra.mxu0 0.0
    %539 = vmatprep.subr.mxu0 0.0
    %540 = vmatpush2.msra.mxu0 0.0
    %541 = vmatprep.subr.mxu0 0.0
    %542 = vmatpush2.msra.mxu0 0.0
    %543 = vmatprep.subr.mxu0 0.0
    %544 = vmatpush2.msra.mxu0 0.0
    %545 = vmatprep.subr.mxu0 0.0
    %546 = vmatpush2.msra.mxu0 0.0
    %547 = vmatprep.subr.mxu0 0.0
    %548 = vmatpush2.msra.mxu0 0.0
    %549 = vmatprep.subr.mxu0 0.0
    %550 = vmatpush2.msra.mxu0 0.0
    %551 = vmatprep.subr.mxu0 0.0
    %552 = vmatpush2.msra.mxu0 0.0
    %553 = vmatprep.subr.mxu0 0.0
    %554 = vmatpush2.msra.mxu0 0.0
    %555 = vmatprep.subr.mxu0 0.0
    %556 = vmatpush2.msra.mxu0 0.0
    %557 = vmatprep.mubr.f32.mxu0 0.0
    %558 = vmatmul.mubr.f32.gmra.mxu0 %v420
    %v559 = vpop.f32.mrf.mxu0
    %v560 = vadd.f32 %v489, %v559
    %v561 = vpop.f32.mrf.mxu0
    %v562 = vadd.f32 %v491, %v561
    %563 = vdwg.mxu0
    %v564 = vld [vmem:[%s4] sm:$0x3]
    %v566 = vlaneseq
    %v567 = vshrl.u32 %v566, 7
    %v568 = vsub.s32 0, %v567
    %v569 = vrot.slane %v564, %v568
    %v570 = vlaneseq
    %v571 = vshrl.u32 %v570, 7
    %v572 = vsub.s32 1, %v571
    %v573 = vrot.slane %v564, %v572
    %v576 = vadd.f32 %v560, %v569
    %v577 = vadd.f32 %v562, %v573
    %v578 = vmax.f32 %v576, 0.0
    %v579 = vmax.f32 %v577, 0.0
    %v580 = vld [vmem:[#allocation10] sm:$0xff]
    %v581 = vld [vmem:[#allocation10 + $0x8] sm:$0xff]
    %v582 = vld [vmem:[#allocation10 + $0x10] sm:$0xff]
    %v583 = vld [vmem:[#allocation10 + $0x18] sm:$0xff]
    %v584 = vld [vmem:[#allocation10 + $0x20] sm:$0xff]
    %v585 = vld [vmem:[#allocation10 + $0x28] sm:$0xff]
    %v586 = vld [vmem:[#allocation10 + $0x30] sm:$0xff]
    %v587 = vld [vmem:[#allocation10 + $0x38] sm:$0xff]
    %v588 = vld [vmem:[#allocation10 + $0x40] sm:$0xff]
    %v589 = vld [vmem:[#allocation10 + $0x48] sm:$0xff]
    %v590 = vld [vmem:[#allocation10 + $0x50] sm:$0xff]
    %v591 = vld [vmem:[#allocation10 + $0x58] sm:$0xff]
    %v592 = vld [vmem:[#allocation10 + $0x60] sm:$0xff]
    %v593 = vld [vmem:[#allocation10 + $0x68] sm:$0xff]
    %v594 = vld [vmem:[#allocation10 + $0x70] sm:$0xff]
    %v595 = vld [vmem:[#allocation10 + $0x78] sm:$0xff]
    %v596 = vld [vmem:[#allocation10 + $0x80] sm:$0xff]
    %v597 = vld [vmem:[#allocation10 + $0x88] sm:$0xff]
    %v598 = vld [vmem:[#allocation10 + $0x90] sm:$0xff]
    %v599 = vld [vmem:[#allocation10 + $0x98] sm:$0xff]
    %v600 = vld [vmem:[#allocation10 + $0xa0] sm:$0xff]
    %v601 = vld [vmem:[#allocation10 + $0xa8] sm:$0xff]
    %v602 = vld [vmem:[#allocation10 + $0xb0] sm:$0xff]
    %v603 = vld [vmem:[#allocation10 + $0xb8] sm:$0xff]
    %v604 = vld [vmem:[#allocation10 + $0xc0] sm:$0xff]
    %v605 = vld [vmem:[#allocation10 + $0xc8] sm:$0xff]
    %v606 = vld [vmem:[#allocation10 + $0xd0] sm:$0xff]
    %v607 = vld [vmem:[#allocation10 + $0xd8] sm:$0xff]
    %v608 = vld [vmem:[#allocation10 + $0xe0] sm:$0xff]
    %v609 = vld [vmem:[#allocation10 + $0xe8] sm:$0xff]
    %v610 = vld [vmem:[#allocation10 + $0xf0] sm:$0xff]
    %v611 = vld [vmem:[#allocation10 + $0xf8] sm:$0xff]
    %v612 = vld [vmem:[%s6] sm:$0x1]
    %v614 = vlaneseq
    %v615 = vshrl.u32 %v614, 7
    %v616 = vsub.s32 0, %v615
    %v617 = vrot.slane %v612, %v616
    %619 = vmatprep.subr.mxu0 0.0
    %620 = vmatpush1.msra.mxu0 %v595
    %621 = vmatprep.subr.mxu0 0.0
    %622 = vmatpush1.msra.mxu0 %v594
    %623 = vmatprep.subr.mxu0 0.0
    %624 = vmatpush1.msra.mxu0 %v593
    %625 = vmatprep.subr.mxu0 0.0
    %626 = vmatpush1.msra.mxu0 %v592
    %627 = vmatprep.subr.mxu0 0.0
    %628 = vmatpush1.msra.mxu0 %v591
    %629 = vmatprep.subr.mxu0 0.0
    %630 = vmatpush1.msra.mxu0 %v590
    %631 = vmatprep.subr.mxu0 0.0
    %632 = vmatpush1.msra.mxu0 %v589
    %633 = vmatprep.subr.mxu0 0.0
    %634 = vmatpush1.msra.mxu0 %v588
    %635 = vmatprep.subr.mxu0 0.0
    %636 = vmatpush1.msra.mxu0 %v587
    %637 = vmatprep.subr.mxu0 0.0
    %638 = vmatpush1.msra.mxu0 %v586
    %639 = vmatprep.subr.mxu0 0.0
    %640 = vmatpush1.msra.mxu0 %v585
    %641 = vmatprep.subr.mxu0 0.0
    %642 = vmatpush1.msra.mxu0 %v584
    %643 = vmatprep.subr.mxu0 0.0
    %644 = vmatpush1.msra.mxu0 %v583
    %645 = vmatprep.subr.mxu0 0.0
    %646 = vmatpush1.msra.mxu0 %v582
    %647 = vmatprep.subr.mxu0 0.0
    %648 = vmatpush1.msra.mxu0 %v581
    %649 = vmatprep.subr.mxu0 0.0
    %650 = vmatpush1.msra.mxu0 %v580
    %651 = vmatprep.subr.mxu0 0.0
    %652 = vmatpush2.msra.mxu0 %v611
    %653 = vmatprep.subr.mxu0 0.0
    %654 = vmatpush2.msra.mxu0 %v610
    %655 = vmatprep.subr.mxu0 0.0
    %656 = vmatpush2.msra.mxu0 %v609
    %657 = vmatprep.subr.mxu0 0.0
    %658 = vmatpush2.msra.mxu0 %v608
    %659 = vmatprep.subr.mxu0 0.0
    %660 = vmatpush2.msra.mxu0 %v607
    %661 = vmatprep.subr.mxu0 0.0
    %662 = vmatpush2.msra.mxu0 %v606
    %663 = vmatprep.subr.mxu0 0.0
    %664 = vmatpush2.msra.mxu0 %v605
    %665 = vmatprep.subr.mxu0 0.0
    %666 = vmatpush2.msra.mxu0 %v604
    %667 = vmatprep.subr.mxu0 0.0
    %668 = vmatpush2.msra.mxu0 %v603
    %669 = vmatprep.subr.mxu0 0.0
    %670 = vmatpush2.msra.mxu0 %v602
    %671 = vmatprep.subr.mxu0 0.0
    %672 = vmatpush2.msra.mxu0 %v601
    %673 = vmatprep.subr.mxu0 0.0
    %674 = vmatpush2.msra.mxu0 %v600
    %675 = vmatprep.subr.mxu0 0.0
    %676 = vmatpush2.msra.mxu0 %v599
    %677 = vmatprep.subr.mxu0 0.0
    %678 = vmatpush2.msra.mxu0 %v598
    %679 = vmatprep.subr.mxu0 0.0
    %680 = vmatpush2.msra.mxu0 %v597
    %681 = vmatprep.subr.mxu0 0.0
    %682 = vmatpush2.msra.mxu0 %v596
    %683 = vmatprep.mubr.f32.mxu0 %v579
    %684 = vmatmul.mubr.f32.gmra.mxu0 %v578
    %v685 = vpop.f32.mrf.mxu0
    %v686 = vadd.f32 %v617, %v685
    %v687 = vpop.f32.mrf.mxu0
    %688 = vdwg.mxu0
    %vm689 = vcmask 1041408
    %v690 = vsel %vm689, %v686, -inf
    %691 = vmax.xlane.f32.xlu0 %v690
    %v692 = vpop.xlane.xlu0 %691
    %v693 = vsub.f32 %v686, %v692
    %v694 = vmul.f32 %v693, 1.442695
    %v695 = vpow.pop %v694
    %v696 = vsel %vm689, %v695, 0.0
    %697 = vadd.xlane.f32.xlu0 %v696
    %v698 = vpop.xlane.xlu0 %697
    %v699 = vrcp.pop %v698
    %v700 = vmul.f32 %v695, %v699
    %701 = vst [vmem:[#allocation11] sm:$0x3] %v700
    // Predicated region
    $region50: #{tpu_custom_call.1} parent=1 // pred_check
      _
    $region51: #{tpu_custom_call.1} parent=1 // pred_check_branch
      %703 = sbr.rel (0) target = $region53
    $region52: #{tpu_custom_call.1} parent=1 // pred_region
      %s705 = ssub.s32 32, 32
      %706 = vsyncadd [#allocation4], %s705
      %s708 = sshll.u32 [#allocation11], 4
      %s709 = int_to_ptr.vmem [resolvable:$true] %s708
      %711 = dma.vmem_to_hbm [thread:$0]  %s709, 32, %s7, [#allocation4]
    $region53: #{tpu_custom_call.1} parent=1 // pred_fallthru
      _
    // Predicated region
    $region54: #{tpu_custom_call.1} parent=1 // pred_check
      _
    $region55: #{tpu_custom_call.1} parent=1 // pred_check_branch
      %713 = sbr.rel (0) target = $region57
    $region56: #{tpu_custom_call.1} parent=1 // pred_region
      %714 = dma.done [#allocation4], 32
    $region57: #{tpu_custom_call.1} parent=1 // pred_fallthru
      _
    %715 = vsyncpa [#allocation3], 1
    %716 = vsyncpa [#allocation6], 1
    %717 = vsyncpa [#allocation9], 1
    %718 = vsyncpa [#allocation4], 1

</llo_original>
